<compile_context>
chip_gen: v7x
topology: tpu7x:2x2x1
jax: 0.10.0
libtpu: 0.0.40
codegen_flags: <defaults>
</compile_context>

<pallas_src>
import functools

import jax
import jax.numpy as jnp
from jax import lax
from jax.experimental import pallas as pl
from jax.experimental.pallas import tpu as pltpu


# ----------------------------- config ---------------------------------------
class Config:
    input_dim = 2048
    hidden_dim1 = 32
    hidden_dim2 = 32
    hidden_dim3 = 32
    output_dim = 8
    dropout = 0.1


config = Config()
ALPHA = 1.0
GAMMA = 2


# ----------------------------- kernel ---------------------------------------
def focal_loss_kernel(xt_ref, out_ref, *, gamma, scale):
    """Elementwise BCE + focal weighting + mean reduction in one block.

    xt_ref: (2, rows, 128) f32 VMEM ref; slice 0 = probabilities, slice 1 = targets.
    out_ref: (1, 1) f32 SMEM ref; receives alpha * mean(focal_loss).
    scale:  compile-time constant alpha / n_elems.
    """
    p = xt_ref[0]
    t = xt_ref[1]

    # torch.nn.functional.binary_cross_entropy clamps log terms at -100.
    log_p = jnp.maximum(jnp.log(p), -100.0)
    log_1mp = jnp.maximum(jnp.log(1.0 - p), -100.0)

    neg_bce = t * log_p + (1.0 - t) * log_1mp          # = -BCE
    bce = -neg_bce
    pt = jnp.exp(neg_bce)                              # reuse neg_bce directly

    one_minus_pt = 1.0 - pt
    if gamma == 2:
        w = jnp.square(one_minus_pt)                   # VALU, no EUP pow
    elif isinstance(gamma, int):
        w = lax.integer_pow(one_minus_pt, gamma)
    else:
        w = one_minus_pt ** gamma                      # general fallback

    # alpha and 1/N folded into one scalar applied once after the reduction.
    out_ref[0, 0] = jnp.sum(w * bce) * jnp.float32(scale)


# ----------------------------- wrapper ---------------------------------------
def focal_loss(inputs, targets, alpha=ALPHA, gamma=GAMMA):
    # Flatten NCHW -> lane-dense 2D slab (rows x 128 lanes), stack probs+targets
    # into one array so the kernel pulls a single DMA stream.
    n = inputs.size
    assert n % 128 == 0, "demo wrapper expects total elements divisible by 128"
    rows = n // 128
    xt = jnp.stack(
        [
            inputs.reshape(rows, 128).astype(jnp.float32),
            targets.reshape(rows, 128).astype(jnp.float32),
        ],
        axis=0,
    )  # (2, rows, 128)

    kernel = functools.partial(
        focal_loss_kernel, gamma=gamma, scale=float(alpha) / float(n)
    )

    out = pl.pallas_call(
        kernel,
        out_shape=jax.ShapeDtypeStruct((1, 1), jnp.float32),
        in_specs=[pl.BlockSpec(memory_space=pltpu.MemorySpace.VMEM)],
        out_specs=pl.BlockSpec(memory_space=pltpu.MemorySpace.SMEM),
        cost_estimate=pl.CostEstimate(
            flops=10 * n,            # a handful of VALU ops per element
            transcendentals=3 * n,   # 2x log + 1x exp per element
            bytes_accessed=xt.size * 4 + 4,
        ),
    )(xt)
    return out[0, 0]


# ------------------- unused (unreachable-in-forward) params ------------------
def init_unused_mlp_params(key):
    # Deterministic init of linear1/linear2/linear3 weights (never used in the
    # reachable forward path, kept for module-shape fidelity).
    k1, k2, k3 = jax.random.split(key, 3)
    params = {
        "linear1_w": jax.random.normal(k1, (config.hidden_dim1, config.input_dim)) * 0.02,
        "linear1_b": jnp.zeros((config.hidden_dim1,)),
        "linear2_w": jax.random.normal(k2, (config.hidden_dim3, config.hidden_dim2)) * 0.02,
        "linear2_b": jnp.zeros((config.hidden_dim3,)),
        "linear3_w": jax.random.normal(k3, (config.output_dim, config.hidden_dim3)) * 0.02,
        "linear3_b": jnp.zeros((config.output_dim,)),
    }
    return params


# ----------------------------- reference -------------------------------------
def focal_loss_ref(inputs, targets, alpha=ALPHA, gamma=GAMMA):
    p = inputs.astype(jnp.float32)
    t = targets.astype(jnp.float32)
    log_p = jnp.maximum(jnp.log(p), -100.0)
    log_1mp = jnp.maximum(jnp.log(1.0 - p), -100.0)
    bce = -(t * log_p + (1.0 - t) * log_1mp)
    pt = jnp.exp(-bce)
    return jnp.mean(alpha * (1.0 - pt) ** gamma * bce)


if __name__ == "__main__":
    key = jax.random.PRNGKey(0)
    k_in, k_tg, k_params = jax.random.split(key, 3)

    # Small NCHW shapes: batch=2, channels=4, spatial=16x16.
    shape = (2, 4, 16, 16)
    inputs = jax.nn.sigmoid(jax.random.normal(k_in, shape, jnp.float32))  # probs in (0,1)
    targets = jax.random.uniform(k_tg, shape, jnp.float32)                # soft targets

    _ = init_unused_mlp_params(k_params)  # deterministic, unused (dead code in Net.forward)
    # TODO(synk): the post-return MLP (linear1/2/3 + dropout) in Net.forward is
    # unreachable, so it is intentionally not implemented as a kernel.

    out = focal_loss(inputs, targets)
    out = jax.block_until_ready(out)

    ref = focal_loss_ref(inputs, targets)
    assert jnp.allclose(out, ref, rtol=1e-5, atol=1e-6), (out, ref)

    print("KERNEL_OK")
</pallas_src>

<mosaic_0001>
module attributes {stable_mosaic.version = 11 : i64} {
  func.func @focal_loss_kernel(%arg0: memref<2x16x128xf32, #tpu.memory_space<vmem>>, %arg1: memref<1x1xf32, #tpu.memory_space<smem>>) attributes {dimension_semantics = [], scalar_prefetch = 0 : i64, scratch_operands = 0 : i64, tpu.core_type = #tpu.core_type<tc>} {
    %c0 = arith.constant 0 : index
    %c0_0 = arith.constant 0 : index
    %c0_1 = arith.constant 0 : index
    %0 = vector.load %arg0[%c0, %c0_0, %c0_1] : memref<2x16x128xf32, #tpu.memory_space<vmem>>, vector<1x16x128xf32>
    %1 = vector.shape_cast %0 : vector<1x16x128xf32> to vector<16x128xf32>
    %c1 = arith.constant 1 : index
    %c0_2 = arith.constant 0 : index
    %c0_3 = arith.constant 0 : index
    %2 = vector.load %arg0[%c1, %c0_2, %c0_3] : memref<2x16x128xf32, #tpu.memory_space<vmem>>, vector<1x16x128xf32>
    %3 = vector.shape_cast %2 : vector<1x16x128xf32> to vector<16x128xf32>
    %4 = math.log %1 : vector<16x128xf32>
    %cst = arith.constant -1.000000e+02 : f32
    %5 = vector.broadcast %cst : f32 to vector<16x128xf32>
    %6 = arith.maximumf %4, %5 : vector<16x128xf32>
    %cst_4 = arith.constant 1.000000e+00 : f32
    %7 = vector.broadcast %cst_4 : f32 to vector<16x128xf32>
    %8 = arith.subf %7, %1 : vector<16x128xf32>
    %9 = math.log %8 : vector<16x128xf32>
    %cst_5 = arith.constant -1.000000e+02 : f32
    %10 = vector.broadcast %cst_5 : f32 to vector<16x128xf32>
    %11 = arith.maximumf %9, %10 : vector<16x128xf32>
    %12 = arith.mulf %3, %6 : vector<16x128xf32>
    %cst_6 = arith.constant 1.000000e+00 : f32
    %13 = vector.broadcast %cst_6 : f32 to vector<16x128xf32>
    %14 = arith.subf %13, %3 : vector<16x128xf32>
    %15 = arith.mulf %14, %11 : vector<16x128xf32>
    %16 = arith.addf %12, %15 : vector<16x128xf32>
    %cst_7 = arith.constant 0.000000e+00 : f32
    %17 = vector.broadcast %cst_7 : f32 to vector<16x128xf32>
    %18 = arith.subf %17, %16 : vector<16x128xf32>
    %19 = math.exp %16 : vector<16x128xf32>
    %cst_8 = arith.constant 1.000000e+00 : f32
    %20 = vector.broadcast %cst_8 : f32 to vector<16x128xf32>
    %21 = arith.subf %20, %19 : vector<16x128xf32>
    %22 = arith.mulf %21, %21 : vector<16x128xf32>
    %23 = arith.mulf %22, %18 : vector<16x128xf32>
    %24 = vector.shape_cast %23 : vector<16x128xf32> to vector<1x16x128xf32>
    %cst_9 = arith.constant dense<0.000000e+00> : vector<1xf32>
    %25 = vector.multi_reduction <add>, %24, %cst_9 [1, 2] : vector<1x16x128xf32> to vector<1xf32>
    %26 = vector.shape_cast %25 : vector<1xf32> to vector<1x1x1xf32>
    %27 = vector.extract %26[0, 0, 0] : f32 from vector<1x1x1xf32>
    %cst_10 = arith.constant 4.8828125E-4 : f32
    %28 = arith.mulf %27, %cst_10 : f32
    %c0_11 = arith.constant 0 : index
    %c0_12 = arith.constant 0 : index
    %29 = memref.load %arg1[%c0_11, %c0_12] : memref<1x1xf32, #tpu.memory_space<smem>>
    memref.store %28, %arg1[%c0_11, %c0_12] : memref<1x1xf32, #tpu.memory_space<smem>>
    return
  }
}

</mosaic_0001>

<llo_original>
// kernel: tpu_custom_call.1
$region0: #{tpu_custom_call.1}
  #allocation0 [shape = 'u32[]', space=smem, size = 0x4, offset = 0x4, fixed_abs, tag = 'smem constant byte address 0x4 - core index']
  #allocation1 [shape = 'u32[144,128]{1,0:T(1,128)}', space=vmem, size = 0x12000, scoped, tag = 'internal scratch']
  %s0 = inlined_call_operand.hbm [shape: f32[2,16,128], index: 0, kind: input, shape index: {}]
  %s1 = inlined_call_operand.hbm [shape: f32[1,1], index: 1, kind: output, shape index: {}]
  %s2 = sld [smem:[#allocation0]]
  $region18: #{tpu_custom_call.1} parent=0
    _
  %s4 = ssub.s32 1, %s2
  %s5 = scalar_select 0, %s4, %s2
  $region1: #{tpu_custom_call.1} parent=0
    #allocation2 [shape = 'u8[16384]{0}', space=vmem, size = 0x4000, scoped, tag = 'input window, operand 0, single buffered']
    #allocation3 [shape = 's32[1]{0}', space=sflag, size = 0x4, scoped, tag = 'scoped memory for tpu_custom_call.1']
    #allocation4 [shape = 's32[1]{0}', space=sflag, size = 0x4, scoped, tag = 'scoped memory for tpu_custom_call.1']
    #allocation5 [shape = 'u8[512]{0}', space=smem, size = 0x200, scoped, tag = 'output window, operand 0, single buffered']
    %6 = vsyncpa [#allocation3], 0
    %7 = vsyncpa [#allocation4], 0
    // Predicated region
    $region2: #{tpu_custom_call.1} parent=1 // pred_check
      _
    $region3: #{tpu_custom_call.1} parent=1 // pred_check_branch
      %9 = sbr.rel (0) target = $region5
    $region4: #{tpu_custom_call.1} parent=1 // pred_region
      %s11 = ssub.s32 512, 512
      %12 = vsyncadd [#allocation3], %s11
      %s13 = sshll.u32 [#allocation2], 4
      %s14 = int_to_ptr.vmem [resolvable:$true] %s13
      %19 = dma.hbm_to_vmem [thread:$0]  %s0, 512, %s14, [#allocation3], 128, 128, 8
    $region5: #{tpu_custom_call.1} parent=1 // pred_fallthru
      _
    // Predicated region
    $region6: #{tpu_custom_call.1} parent=1 // pred_check
      _
    $region7: #{tpu_custom_call.1} parent=1 // pred_check_branch
      %21 = sbr.rel (0) target = $region9
    $region8: #{tpu_custom_call.1} parent=1 // pred_region
      %22 = dma.done [#allocation3], 512
    $region9: #{tpu_custom_call.1} parent=1 // pred_fallthru
      _
    %v23 = vld [vmem:[#allocation2] sm:$0xff]
    %v24 = vld [vmem:[#allocation2 + $0x8] sm:$0xff]
    %s25 = scalar_lea.vmem [#allocation2], 16
    %v26 = vld [vmem:[%s25] sm:$0xff]
    %v27 = vld [vmem:[%s25 + $0x8] sm:$0xff]
    %v28 = vlog2.pop %v23
    %v29 = vmul.f32 %v28, 0.6931472
    %v30 = vlog2.pop %v24
    %v31 = vmul.f32 %v30, 0.6931472
    %v32 = vmax.f32 %v29, -100.0
    %v33 = vmax.f32 %v31, -100.0
    %v34 = vsub.f32 1.0, %v23
    %v35 = vsub.f32 1.0, %v24
    %v36 = vlog2.pop %v34
    %v37 = vmul.f32 %v36, 0.6931472
    %v38 = vlog2.pop %v35
    %v39 = vmul.f32 %v38, 0.6931472
    %v40 = vmax.f32 %v37, -100.0
    %v41 = vmax.f32 %v39, -100.0
    %v42 = vmul.f32 %v26, %v32
    %v43 = vmul.f32 %v27, %v33
    %v44 = vsub.f32 1.0, %v26
    %v45 = vsub.f32 1.0, %v27
    %v46 = vmul.f32 %v44, %v40
    %v47 = vmul.f32 %v45, %v41
    %v48 = vadd.f32 %v42, %v46
    %v49 = vadd.f32 %v43, %v47
    %v50 = vsub.f32 0.0, %v48
    %v51 = vsub.f32 0.0, %v49
    %v52 = vmul.f32 %v48, 1.442695
    %v53 = vpow.pop %v52
    %v54 = vmul.f32 %v49, 1.442695
    %v55 = vpow.pop %v54
    %v56 = vsub.f32 1.0, %v53
    %v57 = vsub.f32 1.0, %v55
    %v58 = vmul.f32 %v56, %v56
    %v59 = vmul.f32 %v57, %v57
    %v60 = vmul.f32 %v58, %v50
    %v61 = vmul.f32 %v59, %v51
    %v62 = vadd.f32 %v60, %v61
    %63 = vadd.xlane.f32.xlu0 %v62
    %v64 = vpop.xlane.xlu0 %63
    %v65 = vrot.slane %v64, 4
    %v66 = vadd.f32 %v64, %v65
    %v67 = vrot.slane %v66, 2
    %v68 = vadd.f32 %v66, %v67
    %v69 = vrot.slane %v68, 1
    %v70 = vadd.f32 %v68, %v69
    %s71 = vtos %v70
    %s72 = smul.f32 %s71, 0.00048828125
    %s73 = scalar_lea.smem [#allocation5], 0
    %74 = sst [smem:[%s73]] %s72
    // Predicated region
    $region10: #{tpu_custom_call.1} parent=1 // pred_check
      _
    $region11: #{tpu_custom_call.1} parent=1 // pred_check_branch
      %76 = sbr.rel (0) target = $region13
    $region12: #{tpu_custom_call.1} parent=1 // pred_region
      %s78 = ssub.s32 16, 16
      %79 = vsyncadd [#allocation4], %s78
      %82 = dma.smem_to_hbm [#allocation5], 16, %s1, [#allocation4]
    $region13: #{tpu_custom_call.1} parent=1 // pred_fallthru
      _
    // Predicated region
    $region14: #{tpu_custom_call.1} parent=1 // pred_check
      _
    $region15: #{tpu_custom_call.1} parent=1 // pred_check_branch
      %84 = sbr.rel (0) target = $region17
    $region16: #{tpu_custom_call.1} parent=1 // pred_region
      %85 = dma.done [#allocation4], 16
    $region17: #{tpu_custom_call.1} parent=1 // pred_fallthru
      _
    %86 = sfence
    %87 = vsyncpa [#allocation3], 1
    %88 = vsyncpa [#allocation4], 1

</llo_original>
